<compile_context>
chip_gen: v5e
topology: v5e:2x2
jax: 0.10.0
libtpu: 0.0.40
codegen_flags: <defaults>
</compile_context>

<pallas_src>
import jax
import jax.numpy as jnp
from jax.experimental import pallas as pl
from jax.experimental.pallas import tpu as pltpu

# ---- small synthetic config (FalconH1Config fields actually used) ----------
HIDDEN = 32                         # config.hidden_size
NUM_HEADS = 4                       # config.num_attention_heads (tp_size = 1)
NUM_KV_HEADS = 2                    # config.num_key_value_heads
HEAD_DIM = HIDDEN // NUM_HEADS      # 8
GROUP = NUM_HEADS // NUM_KV_HEADS   # 2
Q_SIZE = NUM_HEADS * HEAD_DIM       # 32
KV_SIZE = NUM_KV_HEADS * HEAD_DIM   # 16
ROT_DIM = HEAD_DIM                  # full rotary (no partial_rotary_factor)
HALF = ROT_DIM // 2
SCALING = HEAD_DIM ** -0.5
KEY_MULTIPLIER = 0.7                # config.key_multiplier
ROPE_THETA = 1e11                   # default rope_theta in the module
SEQ = 8

LANE = 128
H_PAD = ((HIDDEN + LANE - 1) // LANE) * LANE        # 128

# fused-projection lane layout: [ q(32) | k(16) | v(16) | q_rot(32) | k_rot(16) | pad(16) ]
Q_OFF = 0
K_OFF = Q_SIZE                                      # 32
V_OFF = Q_SIZE + KV_SIZE                            # 48
MAIN_W = Q_SIZE + 2 * KV_SIZE                       # 64
ROT_OFF = MAIN_W                                    # 64  (q_rot ; k_rot at 96)
PROJ_W = MAIN_W + Q_SIZE + KV_SIZE                  # 112
PROJ_PAD = 128
ROLL_SHIFT = ROT_OFF                                # 64
# the single-roll RoPE trick relies on rot block sitting exactly half-width away
assert 2 * ROT_OFF == PROJ_PAD and PROJ_W <= PROJ_PAD


def _pad_to(a, shape, value=0.0):
    pads = [(0, s - d) for d, s in zip(a.shape, shape)]
    return jnp.pad(a, pads, constant_values=value)


# ----------------------------- kernel ---------------------------------------
def _falcon_h1_attn_kernel(x_ref, wf_ref, eq_ref, ek_ref, ev_ref, wo_ref,
                           a_ref, b_ref, o_ref):
    f32, bf16 = jnp.float32, jnp.bfloat16
    T = x_ref.shape[0]

    # (1) single fused projection (q|k|v|q_rot|k_rot packed along lanes).
    proj = jnp.dot(x_ref[...], wf_ref[...], preferred_element_type=f32)   # [T,128]

    # (2) neox RoPE in one pass: the rotate_half partners live exactly 64 lanes
    #     to the right, so one XLU lane-roll + one fused multiply-add applies
    #     RoPE to q and k and passes v through (a=1, b=0 on the v lanes).
    rolled = pltpu.roll(proj, ROLL_SHIFT, axis=1)
    roped = (proj * a_ref[...] + rolled * b_ref[...]).astype(bf16)        # [T,128]

    # (3) head split + GQA activation replication via constant one-hot matmuls
    #     (Mosaic-safe alternative to lane->sublane reshapes; only the tiny
    #     packed activation is replicated across heads, never the weights).
    rb = jnp.broadcast_to(roped[None], (NUM_HEADS, T, PROJ_PAD))          # [NH,T,128]
    qh = jnp.einsum('ntc,ncd->ntd', rb, eq_ref[...],
                    preferred_element_type=f32).astype(bf16)              # [NH,T,D]
    kh = jnp.einsum('ntc,ncd->ntd', rb, ek_ref[...],
                    preferred_element_type=f32).astype(bf16)              # [NH,T,D]
    vh = jnp.einsum('ntc,ncw->ntw', rb, ev_ref[...],
                    preferred_element_type=f32).astype(bf16)              # [NH,T,NH*D]

    # (4) causal attention (softmax scale already folded into the Q weights).
    scores = jnp.einsum('ntd,nsd->nts', qh, kh, preferred_element_type=f32)
    row = jax.lax.broadcasted_iota(jnp.int32, (T, T), 0)
    col = jax.lax.broadcasted_iota(jnp.int32, (T, T), 1)
    scores = jnp.where((row >= col)[None], scores, f32(-1e30))
    m = jnp.max(scores, axis=-1, keepdims=True)
    p = jnp.exp(scores - m)
    p = p * pl.reciprocal(jnp.sum(p, axis=-1, keepdims=True), approx=True)

    # (5) context; the V selector already places each head's output at its
    #     packed lane offset, so summing over heads yields the lane-packed
    #     [T, NH*D] context directly (no [NH,T,H_PAD] intermediate).
    ctx_wide = jnp.einsum('nts,nsw->ntw', p.astype(bf16), vh,
                          preferred_element_type=f32)                     # [NH,T,32]
    ctx = jnp.sum(ctx_wide, axis=0).astype(bf16)                          # [T,32]

    # (6) output projection: one matmul contracting over all heads*dims at once
    #     (head reduction folded into the MXU accumulation, f32 accumulate).
    o_ref[...] = jnp.dot(ctx, wo_ref[...], preferred_element_type=f32)    # [T,128]


# --------------------- one-time weight preprocessing ------------------------
def prepare_falcon_h1_attn_weights(w_qkv, w_o):
    """Packs the layer weights once (hoisted out of the per-call path)."""
    f32, bf16 = jnp.float32, jnp.bfloat16

    # split fused qkv; fold softmax scaling into Q and key_multiplier into K.
    w_q = w_qkv[:, :Q_SIZE].astype(f32) * SCALING
    w_k = w_qkv[:, Q_SIZE:Q_SIZE + KV_SIZE].astype(f32) * KEY_MULTIPLIER
    w_v = w_qkv[:, Q_SIZE + KV_SIZE:].astype(f32)

    # neox rotate_half as a signed permutation of each head's dims, folded into
    # extra projection columns so in-kernel RoPE is one roll + multiply-add.
    i = jnp.arange(HEAD_DIM)[:, None]
    j = jnp.arange(HEAD_DIM)[None, :]
    rot = (jnp.where((i < HALF) & (j == i + HALF), 1.0, 0.0)
           - jnp.where((i >= HALF) & (j == i - HALF), 1.0, 0.0)).astype(f32)
    w_q_rot = w_q @ jnp.kron(jnp.eye(NUM_HEADS, dtype=f32), rot)
    w_k_rot = w_k @ jnp.kron(jnp.eye(NUM_KV_HEADS, dtype=f32), rot)

    # single fused projection weight (K/V at NUM_KV_HEADS width -- no GQA
    # weight replication), lane layout [q | k | v | q_rot | k_rot | 0].
    w_fused = jnp.concatenate([w_q, w_k, w_v, w_q_rot, w_k_rot], axis=1)  # [H,112]
    w_fused = _pad_to(w_fused, (H_PAD, PROJ_PAD)).astype(bf16)            # [128,128]

    # constant one-hot selectors: head split for Q, head split + group
    # replication for K, and (group replication + per-head output-lane
    # placement) for V.  Replication lives here, on tiny constants.
    c = jnp.arange(PROJ_PAD)[None, :, None]
    d = jnp.arange(HEAD_DIM)[None, None, :]
    n = jnp.arange(NUM_HEADS)[:, None, None]
    kv = n // GROUP
    eq = (c == Q_OFF + n * HEAD_DIM + d).astype(bf16)                     # [NH,128,8]
    ek = (c == K_OFF + kv * HEAD_DIM + d).astype(bf16)                    # [NH,128,8]
    w_out = jnp.arange(Q_SIZE)[None, None, :]
    dd_in = c - (V_OFF + kv * HEAD_DIM)
    dd_out = w_out - n * HEAD_DIM
    ev = ((dd_in == dd_out) & (dd_out >= 0)
          & (dd_out < HEAD_DIM)).astype(bf16)                             # [NH,128,32]

    # output projection, rows already head-major / dim-minor as in the module.
    wo_packed = _pad_to(w_o.astype(f32), (Q_SIZE, H_PAD)).astype(bf16)    # [32,128]
    return (w_fused, eq, ek, ev, wo_packed)


# ------------------------------ forward -------------------------------------
@jax.jit
def falcon_h1_attention_decoder_layer(positions, hidden_states, residual, packed):
    """Mirrors FalconH1AttentionDecoderLayer.forward -> (hidden_states, residual)."""
    w_fused, eq, ek, ev, wo_packed = packed
    T, H = hidden_states.shape
    f32 = jnp.float32

    # rotary tables laid out to match the fused-projection lanes:
    #   A = [cos x NH | cos x NKV | ones (v passthrough) | zeros]
    #   B = [sin x NH | sin x NKV | zeros]
    inv_freq = 1.0 / (ROPE_THETA ** (
        jnp.arange(0, ROT_DIM, 2, dtype=f32) / ROT_DIM))
    freqs = positions.astype(f32)[:, None] * inv_freq[None, :]
    cos = jnp.concatenate([jnp.cos(freqs)] * 2, axis=-1)                  # [T,D]
    sin = jnp.concatenate([jnp.sin(freqs)] * 2, axis=-1)
    a_tbl = jnp.concatenate(
        [jnp.tile(cos, (1, NUM_HEADS)), jnp.tile(cos, (1, NUM_KV_HEADS)),
         jnp.ones((T, KV_SIZE), f32),
         jnp.zeros((T, PROJ_PAD - MAIN_W), f32)], axis=-1)                # [T,128]
    b_tbl = jnp.concatenate(
        [jnp.tile(sin, (1, NUM_HEADS)), jnp.tile(sin, (1, NUM_KV_HEADS)),
         jnp.zeros((T, PROJ_PAD - MAIN_W + KV_SIZE), f32)], axis=-1)      # [T,128]

    x_p = _pad_to(hidden_states, (T, H_PAD)).astype(jnp.bfloat16)

    # TODO(synk): the vLLM layer reads/writes a paged KV cache through the
    # Attention backend; this kernel computes causal attention over the in-call
    # window only.  For production sequence lengths this needs a flash-style
    # grid (q-tile axis "parallel" so v7x's two TensorCores split it, kv axis
    # "arbitrary", K/V streamed with Buffered(2), tiles budgeted against v7x's
    # 64 MiB VMEM and 256-wide MXU-aligned shapes on v6e/v7x).
    out_pad = pl.pallas_call(
        _falcon_h1_attn_kernel,
        out_shape=jax.ShapeDtypeStruct((T, H_PAD), jnp.float32),
        in_specs=[pl.BlockSpec(memory_space=pltpu.MemorySpace.VMEM)] * 8,
        out_specs=pl.BlockSpec(memory_space=pltpu.MemorySpace.VMEM),
    )(x_p, w_fused, eq, ek, ev, wo_packed, a_tbl, b_tbl)

    return out_pad[:, :H], residual


# ------------------------- pure-JAX reference -------------------------------
def _reference_forward(positions, x, w_qkv, w_o):
    """Pure-JAX f32 reference of the same forward (sanity check)."""
    T, H = x.shape
    q = x @ w_qkv[:, :Q_SIZE]
    k = (x @ w_qkv[:, Q_SIZE:Q_SIZE + KV_SIZE]) * KEY_MULTIPLIER
    v = x @ w_qkv[:, Q_SIZE + KV_SIZE:]
    inv_freq = 1.0 / (ROPE_THETA ** (
        jnp.arange(0, ROT_DIM, 2, dtype=jnp.float32) / ROT_DIM))
    freqs = positions.astype(jnp.float32)[:, None] * inv_freq[None, :]
    cos, sin = jnp.cos(freqs)[:, None, :], jnp.sin(freqs)[:, None, :]

    def rope(t, nheads):
        t = t.reshape(T, nheads, HEAD_DIM)
        x1, x2 = t[..., :HALF], t[..., HALF:]
        return jnp.concatenate([x1 * cos - x2 * sin, x2 * cos + x1 * sin], -1)

    qh = rope(q, NUM_HEADS)                                   # [T, NH, D]
    kh = jnp.repeat(rope(k, NUM_KV_HEADS), GROUP, axis=1)
    vh = jnp.repeat(v.reshape(T, NUM_KV_HEADS, HEAD_DIM), GROUP, axis=1)
    scores = jnp.einsum('tnd,snd->nts', qh, kh) * SCALING
    mask = jnp.tril(jnp.ones((T, T), bool))
    scores = jnp.where(mask[None], scores, -jnp.inf)
    p = jax.nn.softmax(scores, axis=-1)
    ctx = jnp.einsum('nts,snd->tnd', p, vh).reshape(T, Q_SIZE)
    return ctx @ w_o


if __name__ == "__main__":
    key = jax.random.PRNGKey(0)
    k_x, k_res, k_qkv, k_o = jax.random.split(key, 4)

    positions = jnp.arange(SEQ, dtype=jnp.int32)
    hidden_states = jax.random.normal(k_x, (SEQ, HIDDEN), dtype=jnp.float32)
    residual = jax.random.normal(k_res, (SEQ, HIDDEN), dtype=jnp.float32)

    # deterministic synthetic weights (no bias, matching the module)
    w_qkv = 0.02 * jax.random.normal(
        k_qkv, (HIDDEN, Q_SIZE + 2 * KV_SIZE), dtype=jnp.float32)
    w_o = 0.02 * jax.random.normal(k_o, (Q_SIZE, HIDDEN), dtype=jnp.float32)

    packed = prepare_falcon_h1_attn_weights(w_qkv, w_o)       # one-time packing
    out, res = falcon_h1_attention_decoder_layer(
        positions, hidden_states, residual, packed)
    jax.block_until_ready((out, res))

    assert out.shape == (SEQ, HIDDEN)
    assert res.shape == (SEQ, HIDDEN)
    assert bool(jnp.all(jnp.isfinite(out)))

    ref = _reference_forward(positions, hidden_states, w_qkv, w_o)
    assert bool(jnp.allclose(out, ref, atol=5e-3, rtol=5e-2)), (
        float(jnp.max(jnp.abs(out - ref))))

    print("KERNEL_OK")
</pallas_src>

<mosaic_0001>
module attributes {stable_mosaic.version = 11 : i64} {
  func.func @_falcon_h1_attn_kernel(%arg0: memref<8x128xbf16, #tpu.memory_space<vmem>>, %arg1: memref<128x128xbf16, #tpu.memory_space<vmem>>, %arg2: memref<4x128x8xbf16, #tpu.memory_space<vmem>>, %arg3: memref<4x128x8xbf16, #tpu.memory_space<vmem>>, %arg4: memref<4x128x32xbf16, #tpu.memory_space<vmem>>, %arg5: memref<32x128xbf16, #tpu.memory_space<vmem>>, %arg6: memref<8x128xf32, #tpu.memory_space<vmem>>, %arg7: memref<8x128xf32, #tpu.memory_space<vmem>>, %arg8: memref<8x128xf32, #tpu.memory_space<vmem>>) attributes {dimension_semantics = [], scalar_prefetch = 0 : i64, scratch_operands = 0 : i64, tpu.core_type = #tpu.core_type<tc>} {
    %c0 = arith.constant 0 : index
    %c0_0 = arith.constant 0 : index
    %0 = vector.load %arg0[%c0, %c0_0] : memref<8x128xbf16, #tpu.memory_space<vmem>>, vector<8x128xbf16>
    %c0_1 = arith.constant 0 : index
    %c0_2 = arith.constant 0 : index
    %1 = vector.load %arg1[%c0_1, %c0_2] : memref<128x128xbf16, #tpu.memory_space<vmem>>, vector<128x128xbf16>
    %cst = arith.constant dense<0.000000e+00> : vector<8x128xf32>
    %2 = tpu.matmul %0, %1, %cst {dimension_numbers = #tpu.dot_dimension_numbers<[1], [0], [0], [1], [0, 0, 1, 1], [], []>} : vector<8x128xbf16>, vector<128x128xbf16>, vector<8x128xf32> -> vector<8x128xf32>
    %c64_i32 = arith.constant 64 : i32
    %3 = tpu.dynamic_rotate %2 by %c64_i32 dim 1 : vector<8x128xf32>, i32 -> vector<8x128xf32>
    %c0_3 = arith.constant 0 : index
    %c0_4 = arith.constant 0 : index
    %4 = vector.load %arg6[%c0_3, %c0_4] : memref<8x128xf32, #tpu.memory_space<vmem>>, vector<8x128xf32>
    %5 = arith.mulf %2, %4 : vector<8x128xf32>
    %c0_5 = arith.constant 0 : index
    %c0_6 = arith.constant 0 : index
    %6 = vector.load %arg7[%c0_5, %c0_6] : memref<8x128xf32, #tpu.memory_space<vmem>>, vector<8x128xf32>
    %7 = arith.mulf %3, %6 : vector<8x128xf32>
    %8 = arith.addf %5, %7 : vector<8x128xf32>
    %9 = arith.truncf %8 : vector<8x128xf32> to vector<8x128xbf16>
    %10 = vector.shape_cast %9 : vector<8x128xbf16> to vector<1x8x128xbf16>
    %11 = vector.shape_cast %10 : vector<1x8x128xbf16> to vector<1x8x128xbf16>
    %12 = vector.broadcast %11 : vector<1x8x128xbf16> to vector<4x8x128xbf16>
    %c0_7 = arith.constant 0 : index
    %c0_8 = arith.constant 0 : index
    %c0_9 = arith.constant 0 : index
    %13 = vector.load %arg2[%c0_7, %c0_8, %c0_9] : memref<4x128x8xbf16, #tpu.memory_space<vmem>>, vector<4x128x8xbf16>
    "tpu.trace_start"() <{level = 10 : i32, message = "ntc,ncd->ntd"}> : () -> ()
    %cst_10 = arith.constant dense<0.000000e+00> : vector<4x8x8xf32>
    %14 = tpu.matmul %12, %13, %cst_10 {dimension_numbers = #tpu.dot_dimension_numbers<[2], [1], [1], [2], [0, 0, 0, 1, 1, 2], [0], [0]>} : vector<4x8x128xbf16>, vector<4x128x8xbf16>, vector<4x8x8xf32> -> vector<4x8x8xf32>
    "tpu.trace_stop"() : () -> ()
    %15 = arith.truncf %14 : vector<4x8x8xf32> to vector<4x8x8xbf16>
    %c0_11 = arith.constant 0 : index
    %c0_12 = arith.constant 0 : index
    %c0_13 = arith.constant 0 : index
    %16 = vector.load %arg3[%c0_11, %c0_12, %c0_13] : memref<4x128x8xbf16, #tpu.memory_space<vmem>>, vector<4x128x8xbf16>
    "tpu.trace_start"() <{level = 10 : i32, message = "ntc,ncd->ntd"}> : () -> ()
    %cst_14 = arith.constant dense<0.000000e+00> : vector<4x8x8xf32>
    %17 = tpu.matmul %12, %16, %cst_14 {dimension_numbers = #tpu.dot_dimension_numbers<[2], [1], [1], [2], [0, 0, 0, 1, 1, 2], [0], [0]>} : vector<4x8x128xbf16>, vector<4x128x8xbf16>, vector<4x8x8xf32> -> vector<4x8x8xf32>
    "tpu.trace_stop"() : () -> ()
    %18 = arith.truncf %17 : vector<4x8x8xf32> to vector<4x8x8xbf16>
    %c0_15 = arith.constant 0 : index
    %c0_16 = arith.constant 0 : index
    %c0_17 = arith.constant 0 : index
    %19 = vector.load %arg4[%c0_15, %c0_16, %c0_17] : memref<4x128x32xbf16, #tpu.memory_space<vmem>>, vector<4x128x32xbf16>
    "tpu.trace_start"() <{level = 10 : i32, message = "ntc,ncw->ntw"}> : () -> ()
    %cst_18 = arith.constant dense<0.000000e+00> : vector<4x8x32xf32>
    %20 = tpu.matmul %12, %19, %cst_18 {dimension_numbers = #tpu.dot_dimension_numbers<[2], [1], [1], [2], [0, 0, 0, 1, 1, 2], [0], [0]>} : vector<4x8x128xbf16>, vector<4x128x32xbf16>, vector<4x8x32xf32> -> vector<4x8x32xf32>
    "tpu.trace_stop"() : () -> ()
    %21 = arith.truncf %20 : vector<4x8x32xf32> to vector<4x8x32xbf16>
    "tpu.trace_start"() <{level = 10 : i32, message = "ntd,nsd->nts"}> : () -> ()
    %cst_19 = arith.constant dense<0.000000e+00> : vector<4x8x8xf32>
    %22 = tpu.matmul %15, %18, %cst_19 {dimension_numbers = #tpu.dot_dimension_numbers<[2], [2], [1], [1], [0, 0, 0, 1, 1, 1], [0], [0]>} : vector<4x8x8xbf16>, vector<4x8x8xbf16>, vector<4x8x8xf32> -> vector<4x8x8xf32>
    "tpu.trace_stop"() : () -> ()
    %23 = tpu.iota {dimensions = array<i32: 0>} : vector<8x8xi32>
    %24 = tpu.iota {dimensions = array<i32: 1>} : vector<8x8xi32>
    %25 = arith.cmpi sge, %23, %24 : vector<8x8xi32>
    %26 = vector.shape_cast %25 : vector<8x8xi1> to vector<1x8x8xi1>
    %cst_20 = arith.constant -1.000000e+30 : f32
    %27 = vector.shape_cast %26 : vector<1x8x8xi1> to vector<1x8x8xi1>
    %28 = vector.broadcast %27 : vector<1x8x8xi1> to vector<4x8x8xi1>
    %29 = vector.broadcast %cst_20 : f32 to vector<4x8x8xf32>
    %30 = arith.select %28, %22, %29 : vector<4x8x8xi1>, vector<4x8x8xf32>
    %cst_21 = arith.constant dense<0xFF800000> : vector<4x8xf32>
    %31 = vector.multi_reduction <maximumf>, %30, %cst_21 [2] : vector<4x8x8xf32> to vector<4x8xf32>
    %32 = vector.shape_cast %31 : vector<4x8xf32> to vector<4x8x1xf32>
    %33 = vector.broadcast %32 : vector<4x8x1xf32> to vector<4x8x8xf32>
    %34 = arith.subf %30, %33 : vector<4x8x8xf32>
    %35 = math.exp %34 : vector<4x8x8xf32>
    %cst_22 = arith.constant dense<0.000000e+00> : vector<4x8xf32>
    %36 = vector.multi_reduction <add>, %35, %cst_22 [2] : vector<4x8x8xf32> to vector<4x8xf32>
    %37 = vector.shape_cast %36 : vector<4x8xf32> to vector<4x8x1xf32>
    %38 = tpu.reciprocal %37 {approx = true} : vector<4x8x1xf32> -> vector<4x8x1xf32>
    %39 = vector.broadcast %38 : vector<4x8x1xf32> to vector<4x8x8xf32>
    %40 = arith.mulf %35, %39 : vector<4x8x8xf32>
    %41 = arith.truncf %40 : vector<4x8x8xf32> to vector<4x8x8xbf16>
    "tpu.trace_start"() <{level = 10 : i32, message = "nts,nsw->ntw"}> : () -> ()
    %cst_23 = arith.constant dense<0.000000e+00> : vector<4x8x32xf32>
    %42 = tpu.matmul %41, %21, %cst_23 {dimension_numbers = #tpu.dot_dimension_numbers<[2], [1], [1], [2], [0, 0, 0, 1, 1, 2], [0], [0]>} : vector<4x8x8xbf16>, vector<4x8x32xbf16>, vector<4x8x32xf32> -> vector<4x8x32xf32>
    "tpu.trace_stop"() : () -> ()
    %cst_24 = arith.constant dense<0.000000e+00> : vector<8x32xf32>
    %43 = vector.multi_reduction <add>, %42, %cst_24 [0] : vector<4x8x32xf32> to vector<8x32xf32>
    %44 = arith.truncf %43 : vector<8x32xf32> to vector<8x32xbf16>
    %c0_25 = arith.constant 0 : index
    %c0_26 = arith.constant 0 : index
    %45 = vector.load %arg5[%c0_25, %c0_26] : memref<32x128xbf16, #tpu.memory_space<vmem>>, vector<32x128xbf16>
    %cst_27 = arith.constant dense<0.000000e+00> : vector<8x128xf32>
    %46 = tpu.matmul %44, %45, %cst_27 {dimension_numbers = #tpu.dot_dimension_numbers<[1], [0], [0], [1], [0, 0, 1, 1], [], []>} : vector<8x32xbf16>, vector<32x128xbf16>, vector<8x128xf32> -> vector<8x128xf32>
    %c0_28 = arith.constant 0 : index
    %c0_29 = arith.constant 0 : index
    %47 = vector.load %arg8[%c0_28, %c0_29] : memref<8x128xf32, #tpu.memory_space<vmem>>, vector<8x128xf32>
    tpu.vector_store %arg8[%c0_28, %c0_29], %46 {strides = array<i32>} : memref<8x128xf32, #tpu.memory_space<vmem>>, vector<8x128xf32>,
    return
  }
}

</mosaic_0001>

<llo_original>
// kernel: tile.24
$region0: #{tile.24}
  %s0 = inlined_call_operand.vmem [shape: f32[8,4,8], index: 0, kind: input, shape index: {}]
  %s1 = inlined_call_operand.vmem [shape: f32[8,32], index: 1, kind: output, shape index: {}]
  $region1: #{tile.24} parent=0
    #allocation0 [shape = 'u8[32768]{0}', space=vmem, size = 0x8000, scoped, tag = 'scoped mem for input reshape']
    %s3 = ssub.s32 16, 1
    %s4 = scalar_lea.vmem %s0, 28
    %v5 = vld [vmem:[%s4] sm:%s3]
    %s6 = scalar_lea.vmem [#allocation0], 56
    %7 = vst [vmem:[%s6] sm:%s3] %v5
    %s8 = scalar_lea.vmem %s0, 24
    %v9 = vld [vmem:[%s8] sm:%s3]
    %s10 = scalar_lea.vmem [#allocation0], 48
    %11 = vst [vmem:[%s10] sm:%s3] %v9
    %s12 = scalar_lea.vmem %s0, 20
    %v13 = vld [vmem:[%s12] sm:%s3]
    %s14 = scalar_lea.vmem [#allocation0], 40
    %15 = vst [vmem:[%s14] sm:%s3] %v13
    %s16 = scalar_lea.vmem %s0, 16
    %v17 = vld [vmem:[%s16] sm:%s3]
    %s18 = scalar_lea.vmem [#allocation0], 32
    %19 = vst [vmem:[%s18] sm:%s3] %v17
    %s20 = scalar_lea.vmem %s0, 12
    %v21 = vld [vmem:[%s20] sm:%s3]
    %s22 = scalar_lea.vmem [#allocation0], 24
    %23 = vst [vmem:[%s22] sm:%s3] %v21
    %s24 = scalar_lea.vmem %s0, 8
    %v25 = vld [vmem:[%s24] sm:%s3]
    %s26 = scalar_lea.vmem [#allocation0], 16
    %27 = vst [vmem:[%s26] sm:%s3] %v25
    %s28 = scalar_lea.vmem %s0, 4
    %v29 = vld [vmem:[%s28] sm:%s3]
    %s30 = scalar_lea.vmem [#allocation0], 8
    %31 = vst [vmem:[%s30] sm:%s3] %v29
    %v32 = vld [vmem:[%s0] sm:%s3]
    %33 = vst [vmem:[#allocation0] sm:%s3] %v32
    %v34 = vld [vmem:[#allocation0] ss:$8 sm:$0xf]
    %v35 = vld [vmem:[#allocation0] ss:$8 sm:$0xf0]
    %vm36 = vcmask 1047556
    %v37 = vsel %vm36, %v35, %v34
    %vm38 = vcmask 64512
    %39 = vst.msk [vmem:[%s1] sm:$0xff] %vm38, %v37
    %s40 = scalar_lea.vmem [#allocation0], 3
    %v41 = vld [vmem:[%s40] ss:$8 sm:$0xf]
    %s42 = scalar_lea.vmem [#allocation0], 3
    %v43 = vld [vmem:[%s42] ss:$8 sm:$0xf0]
    %vm44 = vcmask 1047556
    %v45 = vsel %vm44, %v43, %v41
    %46 = vrot.lane.b32.xlu0 %v45, 24
    %v47 = vpop.permute.xlu0 %46
    %vm48 = vcmask 261312
    %49 = vst.msk [vmem:[%s1] sm:$0xff] %vm48, %v47
    %s50 = scalar_lea.vmem [#allocation0], 2
    %v51 = vld [vmem:[%s50] ss:$8 sm:$0xf]
    %s52 = scalar_lea.vmem [#allocation0], 2
    %v53 = vld [vmem:[%s52] ss:$8 sm:$0xf0]
    %vm54 = vcmask 1047556
    %v55 = vsel %vm54, %v53, %v51
    %56 = vrot.lane.b32.xlu0 %v55, 16
    %v57 = vpop.permute.xlu0 %56
    %vm58 = vcmask 195712
    %59 = vst.msk [vmem:[%s1] sm:$0xff] %vm58, %v57
    %s60 = scalar_lea.vmem [#allocation0], 1
    %v61 = vld [vmem:[%s60] ss:$8 sm:$0xf]
    %s62 = scalar_lea.vmem [#allocation0], 1
    %v63 = vld [vmem:[%s62] ss:$8 sm:$0xf0]
    %vm64 = vcmask 1047556
    %v65 = vsel %vm64, %v63, %v61
    %66 = vrot.lane.b32.xlu0 %v65, 8
    %v67 = vpop.permute.xlu0 %66
    %vm68 = vcmask 130112
    %69 = vst.msk [vmem:[%s1] sm:$0xff] %vm68, %v67

// kernel: tile.29
$region0: #{tile.29}
  %s0 = inlined_call_operand.vmem [shape: f32[8,2,8], index: 0, kind: input, shape index: {}]
  %s1 = inlined_call_operand.vmem [shape: f32[8,16], index: 1, kind: output, shape index: {}]
  $region1: #{tile.29} parent=0
    #allocation0 [shape = 'u8[32768]{0}', space=vmem, size = 0x8000, scoped, tag = 'scoped mem for input reshape']
    %s3 = ssub.s32 4, 1
    %s4 = scalar_lea.vmem %s0, 14
    %v5 = vld [vmem:[%s4] sm:%s3]
    %s6 = scalar_lea.vmem [#allocation0], 56
    %7 = vst [vmem:[%s6] sm:%s3] %v5
    %s8 = scalar_lea.vmem %s0, 12
    %v9 = vld [vmem:[%s8] sm:%s3]
    %s10 = scalar_lea.vmem [#allocation0], 48
    %11 = vst [vmem:[%s10] sm:%s3] %v9
    %s12 = scalar_lea.vmem %s0, 10
    %v13 = vld [vmem:[%s12] sm:%s3]
    %s14 = scalar_lea.vmem [#allocation0], 40
    %15 = vst [vmem:[%s14] sm:%s3] %v13
    %s16 = scalar_lea.vmem %s0, 8
    %v17 = vld [vmem:[%s16] sm:%s3]
    %s18 = scalar_lea.vmem [#allocation0], 32
    %19 = vst [vmem:[%s18] sm:%s3] %v17
    %s20 = scalar_lea.vmem %s0, 6
    %v21 = vld [vmem:[%s20] sm:%s3]
    %s22 = scalar_lea.vmem [#allocation0], 24
    %23 = vst [vmem:[%s22] sm:%s3] %v21
    %s24 = scalar_lea.vmem %s0, 4
    %v25 = vld [vmem:[%s24] sm:%s3]
    %s26 = scalar_lea.vmem [#allocation0], 16
    %27 = vst [vmem:[%s26] sm:%s3] %v25
    %s28 = scalar_lea.vmem %s0, 2
    %v29 = vld [vmem:[%s28] sm:%s3]
    %s30 = scalar_lea.vmem [#allocation0], 8
    %31 = vst [vmem:[%s30] sm:%s3] %v29
    %v32 = vld [vmem:[%s0] sm:%s3]
    %33 = vst [vmem:[#allocation0] sm:%s3] %v32
    %v34 = vld [vmem:[#allocation0] ss:$8 sm:$0xf]
    %v35 = vld [vmem:[#allocation0] ss:$8 sm:$0xf0]
    %vm36 = vcmask 1047556
    %v37 = vsel %vm36, %v35, %v34
    %vm38 = vcmask 64512
    %39 = vst.msk [vmem:[%s1] sm:$0xff] %vm38, %v37
    %s40 = scalar_lea.vmem [#allocation0], 1
    %v41 = vld [vmem:[%s40] ss:$8 sm:$0xf]
    %s42 = scalar_lea.vmem [#allocation0], 1
    %v43 = vld [vmem:[%s42] ss:$8 sm:$0xf0]
    %vm44 = vcmask 1047556
    %v45 = vsel %vm44, %v43, %v41
    %46 = vrot.lane.b32.xlu0 %v45, 8
    %v47 = vpop.permute.xlu0 %46
    %vm48 = vcmask 130112
    %49 = vst.msk [vmem:[%s1] sm:$0xff] %vm48, %v47

// kernel: falcon_h1_attention_decoder_layer.1
$region0: #{falcon_h1_attention_decoder_layer.1}
  #allocation0 [shape = 'u32[]', space=smem, size = 0x4, offset = 0x4, fixed_abs, tag = 'smem constant byte address 0x4 - core index']
  #allocation1 [shape = 'u32[72,128]{1,0:T(1,128)}', space=vmem, size = 0x9000, scoped, tag = 'internal scratch']
  %s0 = inlined_call_operand.vmem [shape: bf16[8,128], index: 0, kind: input, shape index: {}]
  %s1 = inlined_call_operand.vmem [shape: bf16[128,128], index: 1, kind: input, shape index: {}]
  %s2 = inlined_call_operand.vmem [shape: bf16[4,128,8], index: 2, kind: input, shape index: {}]
  %s3 = inlined_call_operand.vmem [shape: bf16[4,128,8], index: 3, kind: input, shape index: {}]
  %s4 = inlined_call_operand.vmem [shape: bf16[4,128,32], index: 4, kind: input, shape index: {}]
  %s5 = inlined_call_operand.vmem [shape: bf16[32,128], index: 5, kind: input, shape index: {}]
  %s6 = inlined_call_operand.vmem [shape: f32[8,128], index: 6, kind: input, shape index: {}]
  %s7 = inlined_call_operand.vmem [shape: f32[8,128], index: 7, kind: input, shape index: {}]
  %s8 = inlined_call_operand.hbm [shape: f32[8,128], index: 8, kind: output, shape index: {}]
  %s9 = sld [smem:[#allocation0]]
  $region42: #{falcon_h1_attention_decoder_layer.1} parent=0
    _
  %s11 = ssub.s32 1, %s9
  %s12 = scalar_select 0, %s11, %s9
  $region1: #{falcon_h1_attention_decoder_layer.1} parent=0
    #allocation2 [shape = 'u8[4096]{0}', space=vmem, size = 0x1000, scoped, tag = 'output window, operand 0, single buffered']
    #allocation3 [shape = 's32[1]{0}', space=sflag, size = 0x4, scoped, tag = 'scoped memory for falcon_h1_attention_decoder_layer.1']
    %13 = vsyncpa [#allocation3], 0
    // Predicated region
    $region2: #{falcon_h1_attention_decoder_layer.1} parent=1 // pred_check
      _
    $region3: #{falcon_h1_attention_decoder_layer.1} parent=1 // pred_check_branch
      %15 = sbr.rel (0) target = $region5
    $region4: #{falcon_h1_attention_decoder_layer.1} parent=1 // pred_region
      _
    $region5: #{falcon_h1_attention_decoder_layer.1} parent=1 // pred_fallthru
      _
    // Predicated region
    $region6: #{falcon_h1_attention_decoder_layer.1} parent=1 // pred_check
      _
    $region7: #{falcon_h1_attention_decoder_layer.1} parent=1 // pred_check_branch
      %17 = sbr.rel (0) target = $region9
    $region8: #{falcon_h1_attention_decoder_layer.1} parent=1 // pred_region
      _
    $region9: #{falcon_h1_attention_decoder_layer.1} parent=1 // pred_fallthru
      _
    // Predicated region
    $region10: #{falcon_h1_attention_decoder_layer.1} parent=1 // pred_check
      _
    $region11: #{falcon_h1_attention_decoder_layer.1} parent=1 // pred_check_branch
      %19 = sbr.rel (0) target = $region13
    $region12: #{falcon_h1_attention_decoder_layer.1} parent=1 // pred_region
      _
    $region13: #{falcon_h1_attention_decoder_layer.1} parent=1 // pred_fallthru
      _
    // Predicated region
    $region14: #{falcon_h1_attention_decoder_layer.1} parent=1 // pred_check
      _
    $region15: #{falcon_h1_attention_decoder_layer.1} parent=1 // pred_check_branch
      %21 = sbr.rel (0) target = $region17
    $region16: #{falcon_h1_attention_decoder_layer.1} parent=1 // pred_region
      _
    $region17: #{falcon_h1_attention_decoder_layer.1} parent=1 // pred_fallthru
      _
    // Predicated region
    $region18: #{falcon_h1_attention_decoder_layer.1} parent=1 // pred_check
      _
    $region19: #{falcon_h1_attention_decoder_layer.1} parent=1 // pred_check_branch
      %23 = sbr.rel (0) target = $region21
    $region20: #{falcon_h1_attention_decoder_layer.1} parent=1 // pred_region
      _
    $region21: #{falcon_h1_attention_decoder_layer.1} parent=1 // pred_fallthru
      _
    // Predicated region
    $region22: #{falcon_h1_attention_decoder_layer.1} parent=1 // pred_check
      _
    $region23: #{falcon_h1_attention_decoder_layer.1} parent=1 // pred_check_branch
      %25 = sbr.rel (0) target = $region25
    $region24: #{falcon_h1_attention_decoder_layer.1} parent=1 // pred_region
      _
    $region25: #{falcon_h1_attention_decoder_layer.1} parent=1 // pred_fallthru
      _
    // Predicated region
    $region26: #{falcon_h1_attention_decoder_layer.1} parent=1 // pred_check
      _
    $region27: #{falcon_h1_attention_decoder_layer.1} parent=1 // pred_check_branch
      %27 = sbr.rel (0) target = $region29
    $region28: #{falcon_h1_attention_decoder_layer.1} parent=1 // pred_region
      _
    $region29: #{falcon_h1_attention_decoder_layer.1} parent=1 // pred_fallthru
      _
    // Predicated region
    $region30: #{falcon_h1_attention_decoder_layer.1} parent=1 // pred_check
      _
    $region31: #{falcon_h1_attention_decoder_layer.1} parent=1 // pred_check_branch
      %29 = sbr.rel (0) target = $region33
    $region32: #{falcon_h1_attention_decoder_layer.1} parent=1 // pred_region
      _
    $region33: #{falcon_h1_attention_decoder_layer.1} parent=1 // pred_fallthru
      _
    %v31 = vld [vmem:[%s0] sm:$0xf]
    %v32 = vld [vmem:[%s1] sm:$0xf]
    %v33 = vld [vmem:[%s1 + $0x4] sm:$0xf]
    %v34 = vld [vmem:[%s1 + $0x8] sm:$0xf]
    %v35 = vld [vmem:[%s1 + $0xc] sm:$0xf]
    %v36 = vld [vmem:[%s1 + $0x10] sm:$0xf]
    %v37 = vld [vmem:[%s1 + $0x14] sm:$0xf]
    %v38 = vld [vmem:[%s1 + $0x18] sm:$0xf]
    %v39 = vld [vmem:[%s1 + $0x1c] sm:$0xf]
    %v40 = vld [vmem:[%s1 + $0x20] sm:$0xf]
    %v41 = vld [vmem:[%s1 + $0x24] sm:$0xf]
    %v42 = vld [vmem:[%s1 + $0x28] sm:$0xf]
    %v43 = vld [vmem:[%s1 + $0x2c] sm:$0xf]
    %v44 = vld [vmem:[%s1 + $0x30] sm:$0xf]
    %v45 = vld [vmem:[%s1 + $0x34] sm:$0xf]
    %v46 = vld [vmem:[%s1 + $0x38] sm:$0xf]
    %v47 = vld [vmem:[%s1 + $0x3c] sm:$0xf]
    %v64 = vunpack.c.l.b16 %v32
    %v65 = vunpack.c.l.b16 %v33
    %v66 = vunpack.c.l.b16 %v34
    %v67 = vunpack.c.l.b16 %v35
    %v68 = vunpack.c.l.b16 %v36
    %v69 = vunpack.c.l.b16 %v37
    %v70 = vunpack.c.l.b16 %v38
    %v71 = vunpack.c.l.b16 %v39
    %v72 = vunpack.c.l.b16 %v40
    %v73 = vunpack.c.l.b16 %v41
    %v74 = vunpack.c.l.b16 %v42
    %v75 = vunpack.c.l.b16 %v43
    %v76 = vunpack.c.l.b16 %v44
    %v77 = vunpack.c.l.b16 %v45
    %v78 = vunpack.c.l.b16 %v46
    %v79 = vunpack.c.l.b16 %v47
    %v80 = vpack.c.b16 %v65, %v64
    %v81 = vpack.c.b16 %v67, %v66
    %v82 = vpack.c.b16 %v69, %v68
    %v83 = vpack.c.b16 %v71, %v70
    %v84 = vpack.c.b16 %v73, %v72
    %v85 = vpack.c.b16 %v75, %v74
    %v86 = vpack.c.b16 %v77, %v76
    %v87 = vpack.c.b16 %v79, %v78
    %96 = vmatpush.bf16.msra.mxu0 %v87
    %97 = vmatpush.bf16.msra.mxu0 %v86
    %98 = vmatpush.bf16.msra.mxu0 %v85
    %99 = vmatpush.bf16.msra.mxu0 %v84
    %100 = vmatpush.bf16.msra.mxu0 %v83
    %101 = vmatpush.bf16.msra.mxu0 %v82
    %102 = vmatpush.bf16.msra.mxu0 %v81
    %103 = vmatpush.bf16.msra.mxu0 %v80
    %104 = vmatmul.bf16.gmra.mxu0 %v31
    %v105 = vpop.f32.mrf.mxu0
    %v106 = vadd.f32 0.0, %v105
    %v107 = vpop.f32.mrf.mxu0
    %108 = vdwg.mxu0
    %109 = vrot.lane.b32.xlu0 %v106, 64
    %v110 = vpop.permute.xlu0 %109
    %v111 = vld [vmem:[%s6] sm:$0xff]
    %v112 = vmul.f32 %v106, %v111
    %v113 = vld [vmem:[%s7] sm:$0xff]
    %v114 = vmul.f32 %v110, %v113
    %v115 = vadd.f32 %v112, %v114
    %v116 = vpack.c.bf16 %v115, %v115
    %v117 = vld [vmem:[%s2] sm:$0xf]
    %v118 = vld [vmem:[%s2 + $0x4] sm:$0xf]
    %v119 = vld [vmem:[%s2 + $0x8] sm:$0xf]
    %v120 = vld [vmem:[%s2 + $0xc] sm:$0xf]
    %v121 = vld [vmem:[%s2 + $0x10] sm:$0xf]
    %v122 = vld [vmem:[%s2 + $0x14] sm:$0xf]
    %v123 = vld [vmem:[%s2 + $0x18] sm:$0xf]
    %v124 = vld [vmem:[%s2 + $0x1c] sm:$0xf]
    %v125 = vld [vmem:[%s2 + $0x20] sm:$0xf]
    %v126 = vld [vmem:[%s2 + $0x24] sm:$0xf]
    %v127 = vld [vmem:[%s2 + $0x28] sm:$0xf]
    %v128 = vld [vmem:[%s2 + $0x2c] sm:$0xf]
    %v129 = vld [vmem:[%s2 + $0x30] sm:$0xf]
    %v130 = vld [vmem:[%s2 + $0x34] sm:$0xf]
    %v131 = vld [vmem:[%s2 + $0x38] sm:$0xf]
    %v132 = vld [vmem:[%s2 + $0x3c] sm:$0xf]
    %v133 = vld [vmem:[%s2 + $0x40] sm:$0xf]
    %v134 = vld [vmem:[%s2 + $0x44] sm:$0xf]
    %v135 = vld [vmem:[%s2 + $0x48] sm:$0xf]
    %v136 = vld [vmem:[%s2 + $0x4c] sm:$0xf]
    %v137 = vld [vmem:[%s2 + $0x50] sm:$0xf]
    %v138 = vld [vmem:[%s2 + $0x54] sm:$0xf]
    %v139 = vld [vmem:[%s2 + $0x58] sm:$0xf]
    %v140 = vld [vmem:[%s2 + $0x5c] sm:$0xf]
    %v141 = vld [vmem:[%s2 + $0x60] sm:$0xf]
    %v142 = vld [vmem:[%s2 + $0x64] sm:$0xf]
    %v143 = vld [vmem:[%s2 + $0x68] sm:$0xf]
    %v144 = vld [vmem:[%s2 + $0x6c] sm:$0xf]
    %v145 = vld [vmem:[%s2 + $0x70] sm:$0xf]
    %v146 = vld [vmem:[%s2 + $0x74] sm:$0xf]
    %v147 = vld [vmem:[%s2 + $0x78] sm:$0xf]
    %v148 = vld [vmem:[%s2 + $0x7c] sm:$0xf]
    %v149 = vld [vmem:[%s2 + $0x80] sm:$0xf]
    %v150 = vld [vmem:[%s2 + $0x84] sm:$0xf]
    %v151 = vld [vmem:[%s2 + $0x88] sm:$0xf]
    %v152 = vld [vmem:[%s2 + $0x8c] sm:$0xf]
    %v153 = vld [vmem:[%s2 + $0x90] sm:$0xf]
    %v154 = vld [vmem:[%s2 + $0x94] sm:$0xf]
    %v155 = vld [vmem:[%s2 + $0x98] sm:$0xf]
    %v156 = vld [vmem:[%s2 + $0x9c] sm:$0xf]
    %v157 = vld [vmem:[%s2 + $0xa0] sm:$0xf]
    %v158 = vld [vmem:[%s2 + $0xa4] sm:$0xf]
    %v159 = vld [vmem:[%s2 + $0xa8] sm:$0xf]
    %v160 = vld [vmem:[%s2 + $0xac] sm:$0xf]
    %v161 = vld [vmem:[%s2 + $0xb0] sm:$0xf]
    %v162 = vld [vmem:[%s2 + $0xb4] sm:$0xf]
    %v163 = vld [vmem:[%s2 + $0xb8] sm:$0xf]
    %v164 = vld [vmem:[%s2 + $0xbc] sm:$0xf]
    %v165 = vld [vmem:[%s2 + $0xc0] sm:$0xf]
    %v166 = vld [vmem:[%s2 + $0xc4] sm:$0xf]
    %v167 = vld [vmem:[%s2 + $0xc8] sm:$0xf]
    %v168 = vld [vmem:[%s2 + $0xcc] sm:$0xf]
    %v169 = vld [vmem:[%s2 + $0xd0] sm:$0xf]
    %v170 = vld [vmem:[%s2 + $0xd4] sm:$0xf]
    %v171 = vld [vmem:[%s2 + $0xd8] sm:$0xf]
    %v172 = vld [vmem:[%s2 + $0xdc] sm:$0xf]
    %v173 = vld [vmem:[%s2 + $0xe0] sm:$0xf]
    %v174 = vld [vmem:[%s2 + $0xe4] sm:$0xf]
    %v175 = vld [vmem:[%s2 + $0xe8] sm:$0xf]
    %v176 = vld [vmem:[%s2 + $0xec] sm:$0xf]
    %v177 = vld [vmem:[%s2 + $0xf0] sm:$0xf]
    %v178 = vld [vmem:[%s2 + $0xf4] sm:$0xf]
    %v179 = vld [vmem:[%s2 + $0xf8] sm:$0xf]
    %v180 = vld [vmem:[%s2 + $0xfc] sm:$0xf]
    %v197 = vunpack.c.l.b16 %v117
    %v198 = vunpack.c.l.b16 %v118
    %v199 = vunpack.c.l.b16 %v119
    %v200 = vunpack.c.l.b16 %v120
    %v201 = vunpack.c.l.b16 %v121
    %v202 = vunpack.c.l.b16 %v122
    %v203 = vunpack.c.l.b16 %v123
    %v204 = vunpack.c.l.b16 %v124
    %v205 = vunpack.c.l.b16 %v125
    %v206 = vunpack.c.l.b16 %v126
    %v207 = vunpack.c.l.b16 %v127
    %v208 = vunpack.c.l.b16 %v128
    %v209 = vunpack.c.l.b16 %v129
    %v210 = vunpack.c.l.b16 %v130
    %v211 = vunpack.c.l.b16 %v131
    %v212 = vunpack.c.l.b16 %v132
    %v213 = vpack.c.b16 %v198, %v197
    %v214 = vpack.c.b16 %v200, %v199
    %v215 = vpack.c.b16 %v202, %v201
    %v216 = vpack.c.b16 %v204, %v203
    %v217 = vpack.c.b16 %v206, %v205
    %v218 = vpack.c.b16 %v208, %v207
    %v219 = vpack.c.b16 %v210, %v209
    %v220 = vpack.c.b16 %v212, %v211
    %229 = vmatpush.bf16.msra.mxu0 %v220
    %230 = vmatpush.bf16.msra.mxu0 %v219
    %231 = vmatpush.bf16.msra.mxu0 %v218
    %232 = vmatpush.bf16.msra.mxu0 %v217
    %233 = vmatpush.bf16.msra.mxu0 %v216
    %234 = vmatpush.bf16.msra.mxu0 %v215
    %235 = vmatpush.bf16.msra.mxu0 %v214
    %236 = vmatpush.bf16.msra.mxu0 %v213
    %237 = vmatmul.bf16.gmra.mxu0 %v116
    %v238 = vpop.f32.mrf.mxu0
    %v239 = vadd.f32 0.0, %v238
    %v240 = vpop.f32.mrf.mxu0
    %241 = vdwg.mxu0
    %v258 = vunpack.c.l.b16 %v133
    %v259 = vunpack.c.l.b16 %v134
    %v260 = vunpack.c.l.b16 %v135
    %v261 = vunpack.c.l.b16 %v136
    %v262 = vunpack.c.l.b16 %v137
    %v263 = vunpack.c.l.b16 %v138
    %v264 = vunpack.c.l.b16 %v139
    %v265 = vunpack.c.l.b16 %v140
    %v266 = vunpack.c.l.b16 %v141
    %v267 = vunpack.c.l.b16 %v142
    %v268 = vunpack.c.l.b16 %v143
    %v269 = vunpack.c.l.b16 %v144
    %v270 = vunpack.c.l.b16 %v145
    %v271 = vunpack.c.l.b16 %v146
    %v272 = vunpack.c.l.b16 %v147
    %v273 = vunpack.c.l.b16 %v148
    %v274 = vpack.c.b16 %v259, %v258
    %v275 = vpack.c.b16 %v261, %v260
    %v276 = vpack.c.b16 %v263, %v262
    %v277 = vpack.c.b16 %v265, %v264
    %v278 = vpack.c.b16 %v267, %v266
    %v279 = vpack.c.b16 %v269, %v268
    %v280 = vpack.c.b16 %v271, %v270
    %v281 = vpack.c.b16 %v273, %v272
    %290 = vmatpush.bf16.msra.mxu0 %v281
    %291 = vmatpush.bf16.msra.mxu0 %v280
    %292 = vmatpush.bf16.msra.mxu0 %v279
    %293 = vmatpush.bf16.msra.mxu0 %v278
    %294 = vmatpush.bf16.msra.mxu0 %v277
    %295 = vmatpush.bf16.msra.mxu0 %v276
    %296 = vmatpush.bf16.msra.mxu0 %v275
    %297 = vmatpush.bf16.msra.mxu0 %v274
    %298 = vmatmul.bf16.gmra.mxu0 %v116
    %v299 = vpop.f32.mrf.mxu0
    %v300 = vadd.f32 0.0, %v299
    %v301 = vpop.f32.mrf.mxu0
    %302 = vdwg.mxu0
    %v319 = vunpack.c.l.b16 %v149
    %v320 = vunpack.c.l.b16 %v150
    %v321 = vunpack.c.l.b16 %v151
    %v322 = vunpack.c.l.b16 %v152
    %v323 = vunpack.c.l.b16 %v153
    %v324 = vunpack.c.l.b16 %v154
    %v325 = vunpack.c.l.b16 %v155
    %v326 = vunpack.c.l.b16 %v156
    %v327 = vunpack.c.l.b16 %v157
    %v328 = vunpack.c.l.b16 %v158
    %v329 = vunpack.c.l.b16 %v159
    %v330 = vunpack.c.l.b16 %v160
    %v331 = vunpack.c.l.b16 %v161
    %v332 = vunpack.c.l.b16 %v162
    %v333 = vunpack.c.l.b16 %v163
    %v334 = vunpack.c.l.b16 %v164
    %v335 = vpack.c.b16 %v320, %v319
    %v336 = vpack.c.b16 %v322, %v321
    %v337 = vpack.c.b16 %v324, %v323
    %v338 = vpack.c.b16 %v326, %v325
    %v339 = vpack.c.b16 %v328, %v327
    %v340 = vpack.c.b16 %v330, %v329
    %v341 = vpack.c.b16 %v332, %v331
    %v342 = vpack.c.b16 %v334, %v333
    %351 = vmatpush.bf16.msra.mxu0 %v342
    %352 = vmatpush.bf16.msra.mxu0 %v341
    %353 = vmatpush.bf16.msra.mxu0 %v340
    %354 = vmatpush.bf16.msra.mxu0 %v339
    %355 = vmatpush.bf16.msra.mxu0 %v338
    %356 = vmatpush.bf16.msra.mxu0 %v337
    %357 = vmatpush.bf16.msra.mxu0 %v336
    %358 = vmatpush.bf16.msra.mxu0 %v335
    %359 = vmatmul.bf16.gmra.mxu0 %v116
    %v360 = vpop.f32.mrf.mxu0
    %v361 = vadd.f32 0.0, %v360
    %v362 = vpop.f32.mrf.mxu0
    %363 = vdwg.mxu0
    %v380 = vunpack.c.l.b16 %v165
    %v381 = vunpack.c.l.b16 %v166
    %v382 = vunpack.c.l.b16 %v167
    %v383 = vunpack.c.l.b16 %v168
    %v384 = vunpack.c.l.b16 %v169
    %v385 = vunpack.c.l.b16 %v170
    %v386 = vunpack.c.l.b16 %v171
    %v387 = vunpack.c.l.b16 %v172
    %v388 = vunpack.c.l.b16 %v173
    %v389 = vunpack.c.l.b16 %v174
    %v390 = vunpack.c.l.b16 %v175
    %v391 = vunpack.c.l.b16 %v176
    %v392 = vunpack.c.l.b16 %v177
    %v393 = vunpack.c.l.b16 %v178
    %v394 = vunpack.c.l.b16 %v179
    %v395 = vunpack.c.l.b16 %v180
    %v396 = vpack.c.b16 %v381, %v380
    %v397 = vpack.c.b16 %v383, %v382
    %v398 = vpack.c.b16 %v385, %v384
    %v399 = vpack.c.b16 %v387, %v386
    %v400 = vpack.c.b16 %v389, %v388
    %v401 = vpack.c.b16 %v391, %v390
    %v402 = vpack.c.b16 %v393, %v392
    %v403 = vpack.c.b16 %v395, %v394
    %412 = vmatpush.bf16.msra.mxu0 %v403
    %413 = vmatpush.bf16.msra.mxu0 %v402
    %414 = vmatpush.bf16.msra.mxu0 %v401
    %415 = vmatpush.bf16.msra.mxu0 %v400
    %416 = vmatpush.bf16.msra.mxu0 %v399
    %417 = vmatpush.bf16.msra.mxu0 %v398
    %418 = vmatpush.bf16.msra.mxu0 %v397
    %419 = vmatpush.bf16.msra.mxu0 %v396
    %420 = vmatmul.bf16.gmra.mxu0 %v116
    %v421 = vpop.f32.mrf.mxu0
    %v422 = vadd.f32 0.0, %v421
    %v423 = vpop.f32.mrf.mxu0
    %424 = vdwg.mxu0
    %v425 = vpack.c.bf16 %v239, %v239
    %v426 = vpack.c.bf16 %v300, %v300
    %v427 = vpack.c.bf16 %v361, %v361
    %v428 = vpack.c.bf16 %v422, %v422
    %v429 = vld [vmem:[%s3] sm:$0xf]
    %v430 = vld [vmem:[%s3 + $0x4] sm:$0xf]
    %v431 = vld [vmem:[%s3 + $0x8] sm:$0xf]
    %v432 = vld [vmem:[%s3 + $0xc] sm:$0xf]
    %v433 = vld [vmem:[%s3 + $0x10] sm:$0xf]
    %v434 = vld [vmem:[%s3 + $0x14] sm:$0xf]
    %v435 = vld [vmem:[%s3 + $0x18] sm:$0xf]
    %v436 = vld [vmem:[%s3 + $0x1c] sm:$0xf]
    %v437 = vld [vmem:[%s3 + $0x20] sm:$0xf]
    %v438 = vld [vmem:[%s3 + $0x24] sm:$0xf]
    %v439 = vld [vmem:[%s3 + $0x28] sm:$0xf]
    %v440 = vld [vmem:[%s3 + $0x2c] sm:$0xf]
    %v441 = vld [vmem:[%s3 + $0x30] sm:$0xf]
    %v442 = vld [vmem:[%s3 + $0x34] sm:$0xf]
    %v443 = vld [vmem:[%s3 + $0x38] sm:$0xf]
    %v444 = vld [vmem:[%s3 + $0x3c] sm:$0xf]
    %v445 = vld [vmem:[%s3 + $0x40] sm:$0xf]
    %v446 = vld [vmem:[%s3 + $0x44] sm:$0xf]
    %v447 = vld [vmem:[%s3 + $0x48] sm:$0xf]
    %v448 = vld [vmem:[%s3 + $0x4c] sm:$0xf]
    %v449 = vld [vmem:[%s3 + $0x50] sm:$0xf]
    %v450 = vld [vmem:[%s3 + $0x54] sm:$0xf]
    %v451 = vld [vmem:[%s3 + $0x58] sm:$0xf]
    %v452 = vld [vmem:[%s3 + $0x5c] sm:$0xf]
    %v453 = vld [vmem:[%s3 + $0x60] sm:$0xf]
    %v454 = vld [vmem:[%s3 + $0x64] sm:$0xf]
    %v455 = vld [vmem:[%s3 + $0x68] sm:$0xf]
    %v456 = vld [vmem:[%s3 + $0x6c] sm:$0xf]
    %v457 = vld [vmem:[%s3 + $0x70] sm:$0xf]
    %v458 = vld [vmem:[%s3 + $0x74] sm:$0xf]
    %v459 = vld [vmem:[%s3 + $0x78] sm:$0xf]
    %v460 = vld [vmem:[%s3 + $0x7c] sm:$0xf]
    %v461 = vld [vmem:[%s3 + $0x80] sm:$0xf]
    %v462 = vld [vmem:[%s3 + $0x84] sm:$0xf]
    %v463 = vld [vmem:[%s3 + $0x88] sm:$0xf]
    %v464 = vld [vmem:[%s3 + $0x8c] sm:$0xf]
    %v465 = vld [vmem:[%s3 + $0x90] sm:$0xf]
    %v466 = vld [vmem:[%s3 + $0x94] sm:$0xf]
    %v467 = vld [vmem:[%s3 + $0x98] sm:$0xf]
    %v468 = vld [vmem:[%s3 + $0x9c] sm:$0xf]
    %v469 = vld [vmem:[%s3 + $0xa0] sm:$0xf]
    %v470 = vld [vmem:[%s3 + $0xa4] sm:$0xf]
    %v471 = vld [vmem:[%s3 + $0xa8] sm:$0xf]
    %v472 = vld [vmem:[%s3 + $0xac] sm:$0xf]
    %v473 = vld [vmem:[%s3 + $0xb0] sm:$0xf]
    %v474 = vld [vmem:[%s3 + $0xb4] sm:$0xf]
    %v475 = vld [vmem:[%s3 + $0xb8] sm:$0xf]
    %v476 = vld [vmem:[%s3 + $0xbc] sm:$0xf]
    %v477 = vld [vmem:[%s3 + $0xc0] sm:$0xf]
    %v478 = vld [vmem:[%s3 + $0xc4] sm:$0xf]
    %v479 = vld [vmem:[%s3 + $0xc8] sm:$0xf]
    %v480 = vld [vmem:[%s3 + $0xcc] sm:$0xf]
    %v481 = vld [vmem:[%s3 + $0xd0] sm:$0xf]
    %v482 = vld [vmem:[%s3 + $0xd4] sm:$0xf]
    %v483 = vld [vmem:[%s3 + $0xd8] sm:$0xf]
    %v484 = vld [vmem:[%s3 + $0xdc] sm:$0xf]
    %v485 = vld [vmem:[%s3 + $0xe0] sm:$0xf]
    %v486 = vld [vmem:[%s3 + $0xe4] sm:$0xf]
    %v487 = vld [vmem:[%s3 + $0xe8] sm:$0xf]
    %v488 = vld [vmem:[%s3 + $0xec] sm:$0xf]
    %v489 = vld [vmem:[%s3 + $0xf0] sm:$0xf]
    %v490 = vld [vmem:[%s3 + $0xf4] sm:$0xf]
    %v491 = vld [vmem:[%s3 + $0xf8] sm:$0xf]
    %v492 = vld [vmem:[%s3 + $0xfc] sm:$0xf]
    %v509 = vunpack.c.l.b16 %v429
    %v510 = vunpack.c.l.b16 %v430
    %v511 = vunpack.c.l.b16 %v431
    %v512 = vunpack.c.l.b16 %v432
    %v513 = vunpack.c.l.b16 %v433
    %v514 = vunpack.c.l.b16 %v434
    %v515 = vunpack.c.l.b16 %v435
    %v516 = vunpack.c.l.b16 %v436
    %v517 = vunpack.c.l.b16 %v437
    %v518 = vunpack.c.l.b16 %v438
    %v519 = vunpack.c.l.b16 %v439
    %v520 = vunpack.c.l.b16 %v440
    %v521 = vunpack.c.l.b16 %v441
    %v522 = vunpack.c.l.b16 %v442
    %v523 = vunpack.c.l.b16 %v443
    %v524 = vunpack.c.l.b16 %v444
    %v525 = vpack.c.b16 %v510, %v509
    %v526 = vpack.c.b16 %v512, %v511
    %v527 = vpack.c.b16 %v514, %v513
    %v528 = vpack.c.b16 %v516, %v515
    %v529 = vpack.c.b16 %v518, %v517
    %v530 = vpack.c.b16 %v520, %v519
    %v531 = vpack.c.b16 %v522, %v521
    %v532 = vpack.c.b16 %v524, %v523
    %541 = vmatpush.bf16.msra.mxu0 %v532
    %542 = vmatpush.bf16.msra.mxu0 %v531
    %543 = vmatpush.bf16.msra.mxu0 %v530
    %544 = vmatpush.bf16.msra.mxu0 %v529
    %545 = vmatpush.bf16.msra.mxu0 %v528
    %546 = vmatpush.bf16.msra.mxu0 %v527
    %547 = vmatpush.bf16.msra.mxu0 %v526
    %548 = vmatpush.bf16.msra.mxu0 %v525
    %549 = vmatmul.bf16.gmra.mxu0 %v116
    %v550 = vpop.f32.mrf.mxu0
    %v551 = vadd.f32 0.0, %v550
    %v552 = vpop.f32.mrf.mxu0
    %553 = vdwg.mxu0
    %v570 = vunpack.c.l.b16 %v445
    %v571 = vunpack.c.l.b16 %v446
    %v572 = vunpack.c.l.b16 %v447
    %v573 = vunpack.c.l.b16 %v448
    %v574 = vunpack.c.l.b16 %v449
    %v575 = vunpack.c.l.b16 %v450
    %v576 = vunpack.c.l.b16 %v451
    %v577 = vunpack.c.l.b16 %v452
    %v578 = vunpack.c.l.b16 %v453
    %v579 = vunpack.c.l.b16 %v454
    %v580 = vunpack.c.l.b16 %v455
    %v581 = vunpack.c.l.b16 %v456
    %v582 = vunpack.c.l.b16 %v457
    %v583 = vunpack.c.l.b16 %v458
    %v584 = vunpack.c.l.b16 %v459
    %v585 = vunpack.c.l.b16 %v460
    %v586 = vpack.c.b16 %v571, %v570
    %v587 = vpack.c.b16 %v573, %v572
    %v588 = vpack.c.b16 %v575, %v574
    %v589 = vpack.c.b16 %v577, %v576
    %v590 = vpack.c.b16 %v579, %v578
    %v591 = vpack.c.b16 %v581, %v580
    %v592 = vpack.c.b16 %v583, %v582
    %v593 = vpack.c.b16 %v585, %v584
    %602 = vmatpush.bf16.msra.mxu0 %v593
    %603 = vmatpush.bf16.msra.mxu0 %v592
    %604 = vmatpush.bf16.msra.mxu0 %v591
    %605 = vmatpush.bf16.msra.mxu0 %v590
    %606 = vmatpush.bf16.msra.mxu0 %v589
    %607 = vmatpush.bf16.msra.mxu0 %v588
    %608 = vmatpush.bf16.msra.mxu0 %v587
    %609 = vmatpush.bf16.msra.mxu0 %v586
    %610 = vmatmul.bf16.gmra.mxu0 %v116
    %v611 = vpop.f32.mrf.mxu0
    %v612 = vadd.f32 0.0, %v611
    %v613 = vpop.f32.mrf.mxu0
    %614 = vdwg.mxu0
    %v631 = vunpack.c.l.b16 %v461
    %v632 = vunpack.c.l.b16 %v462
    %v633 = vunpack.c.l.b16 %v463
    %v634 = vunpack.c.l.b16 %v464
    %v635 = vunpack.c.l.b16 %v465
    %v636 = vunpack.c.l.b16 %v466
    %v637 = vunpack.c.l.b16 %v467
    %v638 = vunpack.c.l.b16 %v468
    %v639 = vunpack.c.l.b16 %v469
    %v640 = vunpack.c.l.b16 %v470
    %v641 = vunpack.c.l.b16 %v471
    %v642 = vunpack.c.l.b16 %v472
    %v643 = vunpack.c.l.b16 %v473
    %v644 = vunpack.c.l.b16 %v474
    %v645 = vunpack.c.l.b16 %v475
    %v646 = vunpack.c.l.b16 %v476
    %v647 = vpack.c.b16 %v632, %v631
    %v648 = vpack.c.b16 %v634, %v633
    %v649 = vpack.c.b16 %v636, %v635
    %v650 = vpack.c.b16 %v638, %v637
    %v651 = vpack.c.b16 %v640, %v639
    %v652 = vpack.c.b16 %v642, %v641
    %v653 = vpack.c.b16 %v644, %v643
    %v654 = vpack.c.b16 %v646, %v645
    %663 = vmatpush.bf16.msra.mxu0 %v654
    %664 = vmatpush.bf16.msra.mxu0 %v653
    %665 = vmatpush.bf16.msra.mxu0 %v652
    %666 = vmatpush.bf16.msra.mxu0 %v651
    %667 = vmatpush.bf16.msra.mxu0 %v650
    %668 = vmatpush.bf16.msra.mxu0 %v649
    %669 = vmatpush.bf16.msra.mxu0 %v648
    %670 = vmatpush.bf16.msra.mxu0 %v647
    %671 = vmatmul.bf16.gmra.mxu0 %v116
    %v672 = vpop.f32.mrf.mxu0
    %v673 = vadd.f32 0.0, %v672
    %v674 = vpop.f32.mrf.mxu0
    %675 = vdwg.mxu0
    %v692 = vunpack.c.l.b16 %v477
    %v693 = vunpack.c.l.b16 %v478
    %v694 = vunpack.c.l.b16 %v479
    %v695 = vunpack.c.l.b16 %v480
    %v696 = vunpack.c.l.b16 %v481
    %v697 = vunpack.c.l.b16 %v482
    %v698 = vunpack.c.l.b16 %v483
    %v699 = vunpack.c.l.b16 %v484
    %v700 = vunpack.c.l.b16 %v485
    %v701 = vunpack.c.l.b16 %v486
    %v702 = vunpack.c.l.b16 %v487
    %v703 = vunpack.c.l.b16 %v488
    %v704 = vunpack.c.l.b16 %v489
    %v705 = vunpack.c.l.b16 %v490
    %v706 = vunpack.c.l.b16 %v491
    %v707 = vunpack.c.l.b16 %v492
    %v708 = vpack.c.b16 %v693, %v692
    %v709 = vpack.c.b16 %v695, %v694
    %v710 = vpack.c.b16 %v697, %v696
    %v711 = vpack.c.b16 %v699, %v698
    %v712 = vpack.c.b16 %v701, %v700
    %v713 = vpack.c.b16 %v703, %v702
    %v714 = vpack.c.b16 %v705, %v704
    %v715 = vpack.c.b16 %v707, %v706
    %724 = vmatpush.bf16.msra.mxu0 %v715
    %725 = vmatpush.bf16.msra.mxu0 %v714
    %726 = vmatpush.bf16.msra.mxu0 %v713
    %727 = vmatpush.bf16.msra.mxu0 %v712
    %728 = vmatpush.bf16.msra.mxu0 %v711
    %729 = vmatpush.bf16.msra.mxu0 %v710
    %730 = vmatpush.bf16.msra.mxu0 %v709
    %731 = vmatpush.bf16.msra.mxu0 %v708
    %732 = vmatmul.bf16.gmra.mxu0 %v116
    %v733 = vpop.f32.mrf.mxu0
    %v734 = vadd.f32 0.0, %v733
    %v735 = vpop.f32.mrf.mxu0
    %736 = vdwg.mxu0
    %v737 = vpack.c.bf16 %v551, %v551
    %v738 = vpack.c.bf16 %v612, %v612
    %v739 = vpack.c.bf16 %v673, %v673
    %v740 = vpack.c.bf16 %v734, %v734
    %v741 = vld [vmem:[%s4] sm:$0xf]
    %v742 = vld [vmem:[%s4 + $0x4] sm:$0xf]
    %v743 = vld [vmem:[%s4 + $0x8] sm:$0xf]
    %v744 = vld [vmem:[%s4 + $0xc] sm:$0xf]
    %v745 = vld [vmem:[%s4 + $0x10] sm:$0xf]
    %v746 = vld [vmem:[%s4 + $0x14] sm:$0xf]
    %v747 = vld [vmem:[%s4 + $0x18] sm:$0xf]
    %v748 = vld [vmem:[%s4 + $0x1c] sm:$0xf]
    %v749 = vld [vmem:[%s4 + $0x20] sm:$0xf]
    %v750 = vld [vmem:[%s4 + $0x24] sm:$0xf]
    %v751 = vld [vmem:[%s4 + $0x28] sm:$0xf]
    %v752 = vld [vmem:[%s4 + $0x2c] sm:$0xf]
    %v753 = vld [vmem:[%s4 + $0x30] sm:$0xf]
    %v754 = vld [vmem:[%s4 + $0x34] sm:$0xf]
    %v755 = vld [vmem:[%s4 + $0x38] sm:$0xf]
    %v756 = vld [vmem:[%s4 + $0x3c] sm:$0xf]
    %v757 = vld [vmem:[%s4 + $0x40] sm:$0xf]
    %v758 = vld [vmem:[%s4 + $0x44] sm:$0xf]
    %v759 = vld [vmem:[%s4 + $0x48] sm:$0xf]
    %v760 = vld [vmem:[%s4 + $0x4c] sm:$0xf]
    %v761 = vld [vmem:[%s4 + $0x50] sm:$0xf]
    %v762 = vld [vmem:[%s4 + $0x54] sm:$0xf]
    %v763 = vld [vmem:[%s4 + $0x58] sm:$0xf]
    %v764 = vld [vmem:[%s4 + $0x5c] sm:$0xf]
    %v765 = vld [vmem:[%s4 + $0x60] sm:$0xf]
    %v766 = vld [vmem:[%s4 + $0x64] sm:$0xf]
    %v767 = vld [vmem:[%s4 + $0x68] sm:$0xf]
    %v768 = vld [vmem:[%s4 + $0x6c] sm:$0xf]
    %v769 = vld [vmem:[%s4 + $0x70] sm:$0xf]
    %v770 = vld [vmem:[%s4 + $0x74] sm:$0xf]
    %v771 = vld [vmem:[%s4 + $0x78] sm:$0xf]
    %v772 = vld [vmem:[%s4 + $0x7c] sm:$0xf]
    %v773 = vld [vmem:[%s4 + $0x80] sm:$0xf]
    %v774 = vld [vmem:[%s4 + $0x84] sm:$0xf]
    %v775 = vld [vmem:[%s4 + $0x88] sm:$0xf]
    %v776 = vld [vmem:[%s4 + $0x8c] sm:$0xf]
    %v777 = vld [vmem:[%s4 + $0x90] sm:$0xf]
    %v778 = vld [vmem:[%s4 + $0x94] sm:$0xf]
    %v779 = vld [vmem:[%s4 + $0x98] sm:$0xf]
    %v780 = vld [vmem:[%s4 + $0x9c] sm:$0xf]
    %v781 = vld [vmem:[%s4 + $0xa0] sm:$0xf]
    %v782 = vld [vmem:[%s4 + $0xa4] sm:$0xf]
    %v783 = vld [vmem:[%s4 + $0xa8] sm:$0xf]
    %v784 = vld [vmem:[%s4 + $0xac] sm:$0xf]
    %v785 = vld [vmem:[%s4 + $0xb0] sm:$0xf]
    %v786 = vld [vmem:[%s4 + $0xb4] sm:$0xf]
    %v787 = vld [vmem:[%s4 + $0xb8] sm:$0xf]
    %v788 = vld [vmem:[%s4 + $0xbc] sm:$0xf]
    %v789 = vld [vmem:[%s4 + $0xc0] sm:$0xf]
    %v790 = vld [vmem:[%s4 + $0xc4] sm:$0xf]
    %v791 = vld [vmem:[%s4 + $0xc8] sm:$0xf]
    %v792 = vld [vmem:[%s4 + $0xcc] sm:$0xf]
    %v793 = vld [vmem:[%s4 + $0xd0] sm:$0xf]
    %v794 = vld [vmem:[%s4 + $0xd4] sm:$0xf]
    %v795 = vld [vmem:[%s4 + $0xd8] sm:$0xf]
    %v796 = vld [vmem:[%s4 + $0xdc] sm:$0xf]
    %v797 = vld [vmem:[%s4 + $0xe0] sm:$0xf]
    %v798 = vld [vmem:[%s4 + $0xe4] sm:$0xf]
    %v799 = vld [vmem:[%s4 + $0xe8] sm:$0xf]
    %v800 = vld [vmem:[%s4 + $0xec] sm:$0xf]
    %v801 = vld [vmem:[%s4 + $0xf0] sm:$0xf]
    %v802 = vld [vmem:[%s4 + $0xf4] sm:$0xf]
    %v803 = vld [vmem:[%s4 + $0xf8] sm:$0xf]
    %v804 = vld [vmem:[%s4 + $0xfc] sm:$0xf]
    %v821 = vunpack.c.l.b16 %v741
    %v822 = vunpack.c.l.b16 %v742
    %v823 = vunpack.c.l.b16 %v743
    %v824 = vunpack.c.l.b16 %v744
    %v825 = vunpack.c.l.b16 %v745
    %v826 = vunpack.c.l.b16 %v746
    %v827 = vunpack.c.l.b16 %v747
    %v828 = vunpack.c.l.b16 %v748
    %v829 = vunpack.c.l.b16 %v749
    %v830 = vunpack.c.l.b16 %v750
    %v831 = vunpack.c.l.b16 %v751
    %v832 = vunpack.c.l.b16 %v752
    %v833 = vunpack.c.l.b16 %v753
    %v834 = vunpack.c.l.b16 %v754
    %v835 = vunpack.c.l.b16 %v755
    %v836 = vunpack.c.l.b16 %v756
    %v837 = vpack.c.b16 %v822, %v821
    %v838 = vpack.c.b16 %v824, %v823
    %v839 = vpack.c.b16 %v826, %v825
    %v840 = vpack.c.b16 %v828, %v827
    %v841 = vpack.c.b16 %v830, %v829
    %v842 = vpack.c.b16 %v832, %v831
    %v843 = vpack.c.b16 %v834, %v833
    %v844 = vpack.c.b16 %v836, %v835
    %853 = vmatpush.bf16.msra.mxu0 %v844
    %854 = vmatpush.bf16.msra.mxu0 %v843
    %855 = vmatpush.bf16.msra.mxu0 %v842
    %856 = vmatpush.bf16.msra.mxu0 %v841
    %857 = vmatpush.bf16.msra.mxu0 %v840
    %858 = vmatpush.bf16.msra.mxu0 %v839
    %859 = vmatpush.bf16.msra.mxu0 %v838
    %860 = vmatpush.bf16.msra.mxu0 %v837
    %861 = vmatmul.bf16.gmra.mxu0 %v116
    %v862 = vpop.f32.mrf.mxu0
    %v863 = vadd.f32 0.0, %v862
    %v864 = vpop.f32.mrf.mxu0
    %865 = vdwg.mxu0
    %v882 = vunpack.c.l.b16 %v757
    %v883 = vunpack.c.l.b16 %v758
    %v884 = vunpack.c.l.b16 %v759
    %v885 = vunpack.c.l.b16 %v760
    %v886 = vunpack.c.l.b16 %v761
    %v887 = vunpack.c.l.b16 %v762
    %v888 = vunpack.c.l.b16 %v763
    %v889 = vunpack.c.l.b16 %v764
    %v890 = vunpack.c.l.b16 %v765
    %v891 = vunpack.c.l.b16 %v766
    %v892 = vunpack.c.l.b16 %v767
    %v893 = vunpack.c.l.b16 %v768
    %v894 = vunpack.c.l.b16 %v769
    %v895 = vunpack.c.l.b16 %v770
    %v896 = vunpack.c.l.b16 %v771
    %v897 = vunpack.c.l.b16 %v772
    %v898 = vpack.c.b16 %v883, %v882
    %v899 = vpack.c.b16 %v885, %v884
    %v900 = vpack.c.b16 %v887, %v886
    %v901 = vpack.c.b16 %v889, %v888
    %v902 = vpack.c.b16 %v891, %v890
    %v903 = vpack.c.b16 %v893, %v892
    %v904 = vpack.c.b16 %v895, %v894
    %v905 = vpack.c.b16 %v897, %v896
    %914 = vmatpush.bf16.msra.mxu0 %v905
    %915 = vmatpush.bf16.msra.mxu0 %v904
    %916 = vmatpush.bf16.msra.mxu0 %v903
    %917 = vmatpush.bf16.msra.mxu0 %v902
    %918 = vmatpush.bf16.msra.mxu0 %v901
    %919 = vmatpush.bf16.msra.mxu0 %v900
    %920 = vmatpush.bf16.msra.mxu0 %v899
    %921 = vmatpush.bf16.msra.mxu0 %v898
    %922 = vmatmul.bf16.gmra.mxu0 %v116
    %v923 = vpop.f32.mrf.mxu0
    %v924 = vadd.f32 0.0, %v923
    %v925 = vpop.f32.mrf.mxu0
    %926 = vdwg.mxu0
    %v943 = vunpack.c.l.b16 %v773
    %v944 = vunpack.c.l.b16 %v774
    %v945 = vunpack.c.l.b16 %v775
    %v946 = vunpack.c.l.b16 %v776
    %v947 = vunpack.c.l.b16 %v777
    %v948 = vunpack.c.l.b16 %v778
    %v949 = vunpack.c.l.b16 %v779
    %v950 = vunpack.c.l.b16 %v780
    %v951 = vunpack.c.l.b16 %v781
    %v952 = vunpack.c.l.b16 %v782
    %v953 = vunpack.c.l.b16 %v783
    %v954 = vunpack.c.l.b16 %v784
    %v955 = vunpack.c.l.b16 %v785
    %v956 = vunpack.c.l.b16 %v786
    %v957 = vunpack.c.l.b16 %v787
    %v958 = vunpack.c.l.b16 %v788
    %v959 = vpack.c.b16 %v944, %v943
    %v960 = vpack.c.b16 %v946, %v945
    %v961 = vpack.c.b16 %v948, %v947
    %v962 = vpack.c.b16 %v950, %v949
    %v963 = vpack.c.b16 %v952, %v951
    %v964 = vpack.c.b16 %v954, %v953
    %v965 = vpack.c.b16 %v956, %v955
    %v966 = vpack.c.b16 %v958, %v957
    %975 = vmatpush.bf16.msra.mxu0 %v966
    %976 = vmatpush.bf16.msra.mxu0 %v965
    %977 = vmatpush.bf16.msra.mxu0 %v964
    %978 = vmatpush.bf16.msra.mxu0 %v963
    %979 = vmatpush.bf16.msra.mxu0 %v962
    %980 = vmatpush.bf16.msra.mxu0 %v961
    %981 = vmatpush.bf16.msra.mxu0 %v960
    %982 = vmatpush.bf16.msra.mxu0 %v959
    %983 = vmatmul.bf16.gmra.mxu0 %v116
    %v984 = vpop.f32.mrf.mxu0
    %v985 = vadd.f32 0.0, %v984
    %v986 = vpop.f32.mrf.mxu0
    %987 = vdwg.mxu0
    %v1004 = vunpack.c.l.b16 %v789
    %v1005 = vunpack.c.l.b16 %v790
    %v1006 = vunpack.c.l.b16 %v791
    %v1007 = vunpack.c.l.b16 %v792
    %v1008 = vunpack.c.l.b16 %v793
    %v1009 = vunpack.c.l.b16 %v794
    %v1010 = vunpack.c.l.b16 %v795
    %v1011 = vunpack.c.l.b16 %v796
    %v1012 = vunpack.c.l.b16 %v797
    %v1013 = vunpack.c.l.b16 %v798
    %v1014 = vunpack.c.l.b16 %v799
    %v1015 = vunpack.c.l.b16 %v800
    %v1016 = vunpack.c.l.b16 %v801
    %v1017 = vunpack.c.l.b16 %v802
    %v1018 = vunpack.c.l.b16 %v803
    %v1019 = vunpack.c.l.b16 %v804
    %v1020 = vpack.c.b16 %v1005, %v1004
    %v1021 = vpack.c.b16 %v1007, %v1006
    %v1022 = vpack.c.b16 %v1009, %v1008
    %v1023 = vpack.c.b16 %v1011, %v1010
    %v1024 = vpack.c.b16 %v1013, %v1012
    %v1025 = vpack.c.b16 %v1015, %v1014
    %v1026 = vpack.c.b16 %v1017, %v1016
    %v1027 = vpack.c.b16 %v1019, %v1018
    %1036 = vmatpush.bf16.msra.mxu0 %v1027
    %1037 = vmatpush.bf16.msra.mxu0 %v1026
    %1038 = vmatpush.bf16.msra.mxu0 %v1025
    %1039 = vmatpush.bf16.msra.mxu0 %v1024
    %1040 = vmatpush.bf16.msra.mxu0 %v1023
    %1041 = vmatpush.bf16.msra.mxu0 %v1022
    %1042 = vmatpush.bf16.msra.mxu0 %v1021
    %1043 = vmatpush.bf16.msra.mxu0 %v1020
    %1044 = vmatmul.bf16.gmra.mxu0 %v116
    %v1045 = vpop.f32.mrf.mxu0
    %v1046 = vadd.f32 0.0, %v1045
    %v1047 = vpop.f32.mrf.mxu0
    %1048 = vdwg.mxu0
    %v1049 = vpack.c.bf16 %v863, %v863
    %v1050 = vpack.c.bf16 %v924, %v924
    %v1051 = vpack.c.bf16 %v985, %v985
    %v1052 = vpack.c.bf16 %v1046, %v1046
    %vm1053 = vcmask 64512
    %v1055 = vsel %vm1053, %v425, 0
    %v1058 = vsel %vm1053, %v737, 0
    %1060 = vmatpush.bf16.xpose.msra.mxu0 0
    %1061 = vmatpush.bf16.xpose.msra.mxu0 0
    %1062 = vmatpush.bf16.xpose.msra.mxu0 0
    %1063 = vmatpush.bf16.xpose.msra.mxu0 0
    %1064 = vmatpush.bf16.xpose.msra.mxu0 0
    %1065 = vmatpush.bf16.xpose.msra.mxu0 0
    %1066 = vmatpush.bf16.xpose.msra.mxu0 0
    %1067 = vmatpush.bf16.xpose.msra.mxu0 %v1058
    %1068 = vmatmul.bf16.gmra.mxu0 %v1055
    %v1069 = vpop.f32.mrf.mxu0
    %v1070 = vadd.f32 0.0, %v1069
    %v1071 = vpop.f32.mrf.mxu0
    %1072 = vdwg.mxu0
    %v1074 = vsel %vm1053, %v426, 0
    %v1077 = vsel %vm1053, %v738, 0
    %1079 = vmatpush.bf16.xpose.msra.mxu0 0
    %1080 = vmatpush.bf16.xpose.msra.mxu0 0
    %1081 = vmatpush.bf16.xpose.msra.mxu0 0
    %1082 = vmatpush.bf16.xpose.msra.mxu0 0
    %1083 = vmatpush.bf16.xpose.msra.mxu0 0
    %1084 = vmatpush.bf16.xpose.msra.mxu0 0
    %1085 = vmatpush.bf16.xpose.msra.mxu0 0
    %1086 = vmatpush.bf16.xpose.msra.mxu0 %v1077
    %1087 = vmatmul.bf16.gmra.mxu0 %v1074
    %v1088 = vpop.f32.mrf.mxu0
    %v1089 = vadd.f32 0.0, %v1088
    %v1090 = vpop.f32.mrf.mxu0
    %1091 = vdwg.mxu0
    %v1093 = vsel %vm1053, %v427, 0
    %v1096 = vsel %vm1053, %v739, 0
    %1098 = vmatpush.bf16.xpose.msra.mxu0 0
    %1099 = vmatpush.bf16.xpose.msra.mxu0 0
    %1100 = vmatpush.bf16.xpose.msra.mxu0 0
    %1101 = vmatpush.bf16.xpose.msra.mxu0 0
    %1102 = vmatpush.bf16.xpose.msra.mxu0 0
    %1103 = vmatpush.bf16.xpose.msra.mxu0 0
    %1104 = vmatpush.bf16.xpose.msra.mxu0 0
    %1105 = vmatpush.bf16.xpose.msra.mxu0 %v1096
    %1106 = vmatmul.bf16.gmra.mxu0 %v1093
    %v1107 = vpop.f32.mrf.mxu0
    %v1108 = vadd.f32 0.0, %v1107
    %v1109 = vpop.f32.mrf.mxu0
    %1110 = vdwg.mxu0
    %v1112 = vsel %vm1053, %v428, 0
    %v1115 = vsel %vm1053, %v740, 0
    %1117 = vmatpush.bf16.xpose.msra.mxu0 0
    %1118 = vmatpush.bf16.xpose.msra.mxu0 0
    %1119 = vmatpush.bf16.xpose.msra.mxu0 0
    %1120 = vmatpush.bf16.xpose.msra.mxu0 0
    %1121 = vmatpush.bf16.xpose.msra.mxu0 0
    %1122 = vmatpush.bf16.xpose.msra.mxu0 0
    %1123 = vmatpush.bf16.xpose.msra.mxu0 0
    %1124 = vmatpush.bf16.xpose.msra.mxu0 %v1115
    %1125 = vmatmul.bf16.gmra.mxu0 %v1112
    %v1126 = vpop.f32.mrf.mxu0
    %v1127 = vadd.f32 0.0, %v1126
    %v1128 = vpop.f32.mrf.mxu0
    %1129 = vdwg.mxu0
    %v1130 = vlaneseq
    %v1131 = vshrl.u32 %v1130, 7
    %v1132 = vlaneseq
    %v1133 = vand.u32 %v1132, 127
    %vm1134 = vcmp.ge.s32.totalorder %v1131, %v1133
    %v1135 = vsel %vm1134, 1, 0
    %vm1136 = vcmp.eq.s32.totalorder %v1135, 1
    %v1137 = vsel %vm1136, %v1070, -1e+30
    %v1138 = vsel %vm1136, %v1089, -1e+30
    %v1139 = vsel %vm1136, %v1108, -1e+30
    %v1140 = vsel %vm1136, %v1127, -1e+30
    %v1141 = vsel %vm1053, %v1137, -inf
    %1142 = vmax.xlane.f32.xlu0 %v1141
    %v1143 = vpop.xlane.xlu0 %1142
    %v1144 = vsel %vm1053, %v1138, -inf
    %1145 = vmax.xlane.f32.xlu0 %v1144
    %v1146 = vpop.xlane.xlu0 %1145
    %v1147 = vsel %vm1053, %v1139, -inf
    %1148 = vmax.xlane.f32.xlu0 %v1147
    %v1149 = vpop.xlane.xlu0 %1148
    %v1150 = vsel %vm1053, %v1140, -inf
    %1151 = vmax.xlane.f32.xlu0 %v1150
    %v1152 = vpop.xlane.xlu0 %1151
    %v1153 = vsub.f32 %v1137, %v1143
    %v1154 = vsub.f32 %v1138, %v1146
    %v1155 = vsub.f32 %v1139, %v1149
    %v1156 = vsub.f32 %v1140, %v1152
    %v1157 = vmul.f32 %v1153, 1.442695
    %v1158 = vpow.pop %v1157
    %v1159 = vmul.f32 %v1154, 1.442695
    %v1160 = vpow.pop %v1159
    %v1161 = vmul.f32 %v1155, 1.442695
    %v1162 = vpow.pop %v1161
    %v1163 = vmul.f32 %v1156, 1.442695
    %v1164 = vpow.pop %v1163
    %v1165 = vsel %vm1053, %v1158, 0.0
    %1166 = vadd.xlane.f32.xlu0 %v1165
    %v1167 = vpop.xlane.xlu0 %1166
    %v1168 = vsel %vm1053, %v1160, 0.0
    %1169 = vadd.xlane.f32.xlu0 %v1168
    %v1170 = vpop.xlane.xlu0 %1169
    %v1171 = vsel %vm1053, %v1162, 0.0
    %1172 = vadd.xlane.f32.xlu0 %v1171
    %v1173 = vpop.xlane.xlu0 %1172
    %v1174 = vsel %vm1053, %v1164, 0.0
    %1175 = vadd.xlane.f32.xlu0 %v1174
    %v1176 = vpop.xlane.xlu0 %1175
    %v1177 = vrcp.pop %v1167
    %v1178 = vrcp.pop %v1170
    %v1179 = vrcp.pop %v1173
    %v1180 = vrcp.pop %v1176
    %v1181 = vmul.f32 %v1158, %v1177
    %v1182 = vmul.f32 %v1160, %v1178
    %v1183 = vmul.f32 %v1162, %v1179
    %v1184 = vmul.f32 %v1164, %v1180
    %v1185 = vpack.c.bf16 %v1181, %v1181
    %v1186 = vpack.c.bf16 %v1182, %v1182
    %v1187 = vpack.c.bf16 %v1183, %v1183
    %v1188 = vpack.c.bf16 %v1184, %v1184
    %v1190 = vsel %vm1053, %v1185, 0
    %vm1192 = vcmask 1043456
    %v1194 = vsel %vm1192, %v1049, 0
    %1196 = vmatpush.bf16.msra.mxu0 0
    %1197 = vmatpush.bf16.msra.mxu0 0
    %1198 = vmatpush.bf16.msra.mxu0 0
    %1199 = vmatpush.bf16.msra.mxu0 0
    %1200 = vmatpush.bf16.msra.mxu0 0
    %1201 = vmatpush.bf16.msra.mxu0 0
    %1202 = vmatpush.bf16.msra.mxu0 0
    %1203 = vmatpush.bf16.msra.mxu0 %v1194
    %1204 = vmatmul.bf16.gmra.mxu0 %v1190
    %v1205 = vpop.f32.mrf.mxu0
    %v1206 = vadd.f32 0.0, %v1205
    %v1207 = vpop.f32.mrf.mxu0
    %1208 = vdwg.mxu0
    %v1210 = vsel %vm1053, %v1186, 0
    %v1213 = vsel %vm1192, %v1050, 0
    %1215 = vmatpush.bf16.msra.mxu0 0
    %1216 = vmatpush.bf16.msra.mxu0 0
    %1217 = vmatpush.bf16.msra.mxu0 0
    %1218 = vmatpush.bf16.msra.mxu0 0
    %1219 = vmatpush.bf16.msra.mxu0 0
    %1220 = vmatpush.bf16.msra.mxu0 0
    %1221 = vmatpush.bf16.msra.mxu0 0
    %1222 = vmatpush.bf16.msra.mxu0 %v1213
    %1223 = vmatmul.bf16.gmra.mxu0 %v1210
    %v1224 = vpop.f32.mrf.mxu0
    %v1225 = vadd.f32 0.0, %v1224
    %v1226 = vpop.f32.mrf.mxu0
    %1227 = vdwg.mxu0
    %v1229 = vsel %vm1053, %v1187, 0
    %v1232 = vsel %vm1192, %v1051, 0
    %1234 = vmatpush.bf16.msra.mxu0 0
    %1235 = vmatpush.bf16.msra.mxu0 0
    %1236 = vmatpush.bf16.msra.mxu0 0
    %1237 = vmatpush.bf16.msra.mxu0 0
    %1238 = vmatpush.bf16.msra.mxu0 0
    %1239 = vmatpush.bf16.msra.mxu0 0
    %1240 = vmatpush.bf16.msra.mxu0 0
    %1241 = vmatpush.bf16.msra.mxu0 %v1232
    %1242 = vmatmul.bf16.gmra.mxu0 %v1229
    %v1243 = vpop.f32.mrf.mxu0
    %v1244 = vadd.f32 0.0, %v1243
    %v1245 = vpop.f32.mrf.mxu0
    %1246 = vdwg.mxu0
    %v1248 = vsel %vm1053, %v1188, 0
    %v1251 = vsel %vm1192, %v1052, 0
    %1253 = vmatpush.bf16.msra.mxu0 0
    %1254 = vmatpush.bf16.msra.mxu0 0
    %1255 = vmatpush.bf16.msra.mxu0 0
    %1256 = vmatpush.bf16.msra.mxu0 0
    %1257 = vmatpush.bf16.msra.mxu0 0
    %1258 = vmatpush.bf16.msra.mxu0 0
    %1259 = vmatpush.bf16.msra.mxu0 0
    %1260 = vmatpush.bf16.msra.mxu0 %v1251
    %1261 = vmatmul.bf16.gmra.mxu0 %v1248
    %v1262 = vpop.f32.mrf.mxu0
    %v1263 = vadd.f32 0.0, %v1262
    %v1264 = vpop.f32.mrf.mxu0
    %1265 = vdwg.mxu0
    %vm1266 = vcmask 261120
    %v1267 = vsel %vm1266, %v1206, 0.0
    %v1268 = vsel %vm1266, %v1225, 0.0
    %v1269 = vadd.f32 %v1267, %v1268
    %v1270 = vsel %vm1266, %v1244, 0.0
    %v1271 = vadd.f32 %v1269, %v1270
    %v1272 = vsel %vm1266, %v1263, 0.0
    %v1273 = vadd.f32 %v1271, %v1272
    %v1274 = vpack.c.bf16 %v1273, %v1273
    %v1275 = vld [vmem:[%s5] sm:$0xf]
    %v1276 = vld [vmem:[%s5 + $0x4] sm:$0xf]
    %v1277 = vld [vmem:[%s5 + $0x8] sm:$0xf]
    %v1278 = vld [vmem:[%s5 + $0xc] sm:$0xf]
    %v1283 = vunpack.c.l.b16 %v1275
    %v1284 = vunpack.c.l.b16 %v1276
    %v1285 = vunpack.c.l.b16 %v1277
    %v1286 = vunpack.c.l.b16 %v1278
    %v1287 = vpack.c.b16 %v1284, %v1283
    %v1288 = vpack.c.b16 %v1286, %v1285
    %v1292 = vsel %vm1266, %v1274, 0
    %1294 = vmatpush.bf16.msra.mxu0 0
    %1295 = vmatpush.bf16.msra.mxu0 0
    %1296 = vmatpush.bf16.msra.mxu0 0
    %1297 = vmatpush.bf16.msra.mxu0 0
    %1298 = vmatpush.bf16.msra.mxu0 0
    %1299 = vmatpush.bf16.msra.mxu0 0
    %1300 = vmatpush.bf16.msra.mxu0 %v1288
    %1301 = vmatpush.bf16.msra.mxu0 %v1287
    %1302 = vmatmul.bf16.gmra.mxu0 %v1292
    %v1303 = vpop.f32.mrf.mxu0
    %v1304 = vadd.f32 0.0, %v1303
    %v1305 = vpop.f32.mrf.mxu0
    %1306 = vdwg.mxu0
    %1307 = vst [vmem:[#allocation2] sm:$0xff] %v1304
    // Predicated region
    $region34: #{falcon_h1_attention_decoder_layer.1} parent=1 // pred_check
      _
    $region35: #{falcon_h1_attention_decoder_layer.1} parent=1 // pred_check_branch
      %1309 = sbr.rel (0) target = $region37
    $region36: #{falcon_h1_attention_decoder_layer.1} parent=1 // pred_region
      %1311 = vsyncadd [#allocation3], 0
      %s1313 = sshll.u32 [#allocation2], 4
      %s1314 = int_to_ptr.vmem [resolvable:$true] %s1313
      %s1315 = sshll.u32 %s8, 4
      %s1316 = int_to_ptr.hbm [resolvable:$true] %s1315
      %1318 = dma.vmem_to_hbm [thread:$0]  %s1314, 128, %s1316, [#allocation3]
    $region37: #{falcon_h1_attention_decoder_layer.1} parent=1 // pred_fallthru
      _
    // Predicated region
    $region38: #{falcon_h1_attention_decoder_layer.1} parent=1 // pred_check
      _
    $region39: #{falcon_h1_attention_decoder_layer.1} parent=1 // pred_check_branch
      %1320 = sbr.rel (0) target = $region41
    $region40: #{falcon_h1_attention_decoder_layer.1} parent=1 // pred_region
      %1322 = dma.done [#allocation3], 128
    $region41: #{falcon_h1_attention_decoder_layer.1} parent=1 // pred_fallthru
      _
    %1323 = vsyncpa [#allocation3], 1

</llo_original>
